<compile_context>
chip_gen: v7x
topology: tpu7x:2x2x1
jax: 0.10.0
libtpu: 0.0.40
codegen_flags: <defaults>
</compile_context>

<pallas_src>
import functools
import math

import jax
import jax.numpy as jnp
from jax.experimental import pallas as pl
from jax.experimental.pallas import tpu as pltpu


def _dconv_kernel(x_ref, wdw_ref, wpw_ref, b_ref, out_ref, *, K, W, C, Co, block_n):
    """One batch-block per grid step.

    x_ref   : (block_n*C, HW)        input rows, (n, c)-major, spatial on lanes
    wdw_ref : (K*K, block_n*C, HW)   per-tap depthwise weight x 'same' mask planes
    wpw_ref : (C, Co, HW)            pointwise weights, pre-broadcast along lanes
    b_ref   : (Co, HW)               pointwise bias, pre-broadcast along lanes
    out_ref : (block_n*Co, HW)       output rows, (n, co)-major
    """
    HW = x_ref.shape[-1]
    p = (K - 1) // 2

    x = x_ref[...]
    if x.dtype != jnp.float32:
        x = x.astype(jnp.float32)          # keep accumulation in f32 (v5e-safe)

    # --- depthwise KxK conv: one full-slab vmul (+vadd) per tap -----------------
    # The halo/'same' zero padding is already baked into wdw_ref (weight * mask),
    # so no compares or selects are needed; the lane shift is XLU rotation work.
    acc = None
    for kh in range(K):
        dh = kh - p
        for kw in range(K):
            dw = kw - p
            shift = (-(dh * W + dw)) % HW
            shifted = x if shift == 0 else pltpu.roll(x, shift, axis=1)
            term = shifted * wdw_ref[kh * K + kw]
            acc = term if acc is None else acc + term

    # --- pointwise 1x1 conv (+bias): full-slab VPU FMAs, single full store ------
    # Per (n, c): broadcast the depthwise row to Co sublanes (XLU, which has
    # slack) and FMA with the lane-broadcast weight plane -> block_n*C vmuls,
    # the VPU minimum for this contraction.
    # TODO(synk): for large C/Co (>=128) switch this to an MXU dot over the slab.
    wpw = wpw_ref[...]                      # (C, Co, HW)
    bias = b_ref[...]                       # (Co, HW)
    outs = []
    for n in range(block_n):
        o_n = bias
        for c in range(C):
            src = jnp.broadcast_to(acc[n * C + c][None, :], (Co, HW))
            o_n = o_n + src * wpw[c]
        outs.append(o_n)
    out = outs[0] if block_n == 1 else jnp.concatenate(outs, axis=0)
    out_ref[...] = out.astype(out_ref.dtype)   # one unmasked full-tile store


def _sublane_unit(ch):
    """Smallest batch count so that `count*ch` rows fill whole 8-sublane tiles."""
    return 1 if ch % 8 == 0 else 8 // math.gcd(ch, 8)


def _vmem_budget_bytes():
    # Per-step planning budget. v7x has 64 MiB VMEM (keep blocks ~<=32 MiB);
    # v5e/v6e have 128 MiB and can afford deeper blocks to amortize the ~0.35us
    # per-step pipeline overhead.
    try:
        cap = int(pltpu.get_tpu_info().vmem_capacity_bytes)
        return max(24 * 1024 * 1024, min(cap // 2, 56 * 1024 * 1024))
    except Exception:
        return 24 * 1024 * 1024


def _pick_block_n(N, C, Co, HW, K, itemsize, budget):
    n_unit = math.lcm(_sublane_unit(C), _sublane_unit(Co))
    per_batch = (2 * C * itemsize           # double-buffered input rows
                 + 2 * Co * itemsize        # double-buffered output rows
                 + 2 * K * K * C * 4        # per-tap weight*mask planes
                 + 3 * C * 4                # f32 x / shifted / acc temporaries
                 + 2 * Co * 4) * HW         # pointwise planes + output temp
    m_max = max(1, int(budget // max(per_batch * n_unit, 1)))
    m_max = min(m_max, max(1, 64 // n_unit))     # bound the pointwise Python unroll
    m_need = pl.cdiv(N, n_unit)
    m = min(m_max, m_need)
    if m_need >= 2:                              # >=2 grid steps for v7x's 2 TensorCores
        m = min(m, max(1, m_need // 2))
    return n_unit * m


def dconv_pallas(x_nchw, w_dw, w_pw, b_pw, *, block_n=None):
    """x_nchw: (N, C, H, W); w_dw: (C, 1, K, K); w_pw: (Co, C, 1, 1); b_pw: (Co,)."""
    N, C, H, W = x_nchw.shape
    K = w_dw.shape[-1]
    Co = w_pw.shape[0]
    assert K % 2 == 1, "padding='same' implemented for odd kernel sizes"
    HW = H * W
    p = (K - 1) // 2

    budget = _vmem_budget_bytes()
    if block_n is None:
        block_n = _pick_block_n(N, C, Co, HW, K, x_nchw.dtype.itemsize, budget)
    n_pad = (-N) % block_n                    # pad the batch instead of shrinking blocks
    Np = N + n_pad
    grid = (Np // block_n,)

    # Channel-major rows: pure metadata reshape, no transpose / jnp.pad of x.
    x_rows = x_nchw.reshape(N * C, HW)
    if n_pad:
        x_rows = jnp.concatenate(
            [x_rows, jnp.zeros((n_pad * C, HW), x_rows.dtype)], axis=0)

    # Per-tap (depthwise weight x 'same'-padding mask) planes, tiled to the block's
    # rows. Masking is thereby free inside the kernel (a single multiply per tap).
    sp = jnp.arange(HW, dtype=jnp.int32)
    row, col = sp // W, sp % W
    masks = []
    for kh in range(K):
        dh = kh - p
        for kw in range(K):
            dw = kw - p
            valid = ((row + dh >= 0) & (row + dh < H) &
                     (col + dw >= 0) & (col + dw < W))
            masks.append(valid.astype(jnp.float32))
    mask = jnp.stack(masks, axis=0)                               # (K*K, HW)
    wdw = w_dw.reshape(C, K * K).astype(jnp.float32)              # (C, K*K)
    wmask = wdw.T[:, :, None] * mask[:, None, :]                  # (K*K, C, HW)
    wmask = jnp.tile(wmask, (1, block_n, 1))                      # (K*K, block_n*C, HW)

    # Pointwise weights / bias pre-broadcast along lanes (tiny, DMA'd once).
    wpw_b = jnp.broadcast_to(
        w_pw.reshape(Co, C).T.astype(jnp.float32)[:, :, None], (C, Co, HW))
    bias_b = jnp.broadcast_to(b_pw.astype(jnp.float32)[:, None], (Co, HW))

    # TODO(synk): for H*W not a multiple of 128, pad W (and adjust the flattened
    # roll offsets / masks) so output stores stay unmasked lane-dense vst.
    # TODO(synk): for large H*W add an H-strip grid axis with a (K-1)-row halo.
    out_rows = pl.pallas_call(
        functools.partial(_dconv_kernel, K=K, W=W, C=C, Co=Co, block_n=block_n),
        out_shape=jax.ShapeDtypeStruct((Np * Co, HW), x_nchw.dtype),
        grid_spec=pltpu.PrefetchScalarGridSpec(
            num_scalar_prefetch=0,
            grid=grid,
            in_specs=[
                pl.BlockSpec((block_n * C, HW), lambda n: (n, 0)),        # x rows
                pl.BlockSpec((K * K, block_n * C, HW), lambda n: (0, 0, 0)),  # dw w*mask
                pl.BlockSpec((C, Co, HW), lambda n: (0, 0, 0)),           # pw weights
                pl.BlockSpec((Co, HW), lambda n: (0, 0)),                 # pw bias
            ],
            out_specs=pl.BlockSpec((block_n * Co, HW), lambda n: (n, 0)),
        ),
        compiler_params=pltpu.CompilerParams(
            dimension_semantics=("parallel",),
            vmem_limit_bytes=budget + 8 * 1024 * 1024,
        ),
    )(x_rows, wmask, wpw_b, bias_b)

    # Rows are already (n, co)-major: a free reshape lands back in NCHW.
    return out_rows[: N * Co].reshape(N, Co, H, W)


def _reference_dconv(x_nchw, w_dw, w_pw, b_pw):
    """Pure-JAX reference matching torch.nn semantics (f32-accurate)."""
    C = x_nchw.shape[1]
    dn = ("NCHW", "OIHW", "NCHW")
    y = jax.lax.conv_general_dilated(
        x_nchw, w_dw, window_strides=(1, 1), padding="SAME",
        dimension_numbers=dn, feature_group_count=C,
        precision=jax.lax.Precision.HIGHEST)
    y = jax.lax.conv_general_dilated(
        y, w_pw, window_strides=(1, 1), padding="VALID",
        dimension_numbers=dn, precision=jax.lax.Precision.HIGHEST)
    return y + b_pw.reshape(1, -1, 1, 1)


if __name__ == "__main__":
    # Module config: in_channels=4, out_channel=8, kernel_size=3, padding='same'.
    N, C, H, W = 2, 4, 16, 16
    K, Co = 3, 8

    key = jax.random.PRNGKey(0)
    kx, kdw, kpw, kb = jax.random.split(key, 4)

    x = jax.random.normal(kx, (N, C, H, W), dtype=jnp.float32)
    w_dw = jax.random.normal(kdw, (C, 1, K, K), dtype=jnp.float32) * 0.1   # depthwise (bias=False)
    w_pw = jax.random.normal(kpw, (Co, C, 1, 1), dtype=jnp.float32) * 0.1  # pointwise
    b_pw = jax.random.normal(kb, (Co,), dtype=jnp.float32) * 0.1           # pointwise bias

    out = dconv_pallas(x, w_dw, w_pw, b_pw)
    out = jax.block_until_ready(out)

    ref = _reference_dconv(x, w_dw, w_pw, b_pw)
    assert out.shape == (N, Co, H, W), out.shape
    assert jnp.allclose(out, ref, atol=1e-4, rtol=1e-4), float(jnp.max(jnp.abs(out - ref)))

    print("KERNEL_OK")
</pallas_src>

<mosaic_0001>
module attributes {stable_mosaic.version = 11 : i64} {
  func.func @_dconv_kernel(%arg0: i32, %arg1: memref<8x256xf32, #tpu.memory_space<vmem>>, %arg2: memref<9x8x256xf32, #tpu.memory_space<vmem>>, %arg3: memref<4x8x256xf32, #tpu.memory_space<vmem>>, %arg4: memref<8x256xf32, #tpu.memory_space<vmem>>, %arg5: memref<16x256xf32, #tpu.memory_space<vmem>>) attributes {dimension_semantics = [#tpu.dimension_semantics<parallel>], iteration_bounds = array<i64: 1>, scalar_prefetch = 0 : i64, scratch_operands = 0 : i64, tpu.core_type = #tpu.core_type<tc>, window_params = [{transform_indices = @transform_0, window_bounds = array<i64: 8, 256>}, {pipeline_mode = #tpu.pipeline_mode<synchronous>, transform_indices = @transform_1, window_bounds = array<i64: 9, 8, 256>}, {pipeline_mode = #tpu.pipeline_mode<synchronous>, transform_indices = @transform_2, window_bounds = array<i64: 4, 8, 256>}, {pipeline_mode = #tpu.pipeline_mode<synchronous>, transform_indices = @transform_3, window_bounds = array<i64: 8, 256>}, {transform_indices = @transform_4, window_bounds = array<i64: 16, 256>}]} {
    %c0 = arith.constant 0 : index
    %c0_0 = arith.constant 0 : index
    %0 = vector.load %arg1[%c0, %c0_0] : memref<8x256xf32, #tpu.memory_space<vmem>>, vector<8x256xf32>
    %c17_i32 = arith.constant 17 : i32
    %1 = tpu.dynamic_rotate %0 by %c17_i32 dim 1 : vector<8x256xf32>, i32 -> vector<8x256xf32>
    %c0_1 = arith.constant 0 : index
    %c0_2 = arith.constant 0 : index
    %c0_3 = arith.constant 0 : index
    %2 = vector.load %arg2[%c0_1, %c0_2, %c0_3] : memref<9x8x256xf32, #tpu.memory_space<vmem>>, vector<1x8x256xf32>
    %3 = vector.shape_cast %2 : vector<1x8x256xf32> to vector<8x256xf32>
    %4 = arith.mulf %1, %3 : vector<8x256xf32>
    %c16_i32 = arith.constant 16 : i32
    %5 = tpu.dynamic_rotate %0 by %c16_i32 dim 1 : vector<8x256xf32>, i32 -> vector<8x256xf32>
    %c1 = arith.constant 1 : index
    %c0_4 = arith.constant 0 : index
    %c0_5 = arith.constant 0 : index
    %6 = vector.load %arg2[%c1, %c0_4, %c0_5] : memref<9x8x256xf32, #tpu.memory_space<vmem>>, vector<1x8x256xf32>
    %7 = vector.shape_cast %6 : vector<1x8x256xf32> to vector<8x256xf32>
    %8 = arith.mulf %5, %7 : vector<8x256xf32>
    %9 = arith.addf %4, %8 : vector<8x256xf32>
    %c15_i32 = arith.constant 15 : i32
    %10 = tpu.dynamic_rotate %0 by %c15_i32 dim 1 : vector<8x256xf32>, i32 -> vector<8x256xf32>
    %c2 = arith.constant 2 : index
    %c0_6 = arith.constant 0 : index
    %c0_7 = arith.constant 0 : index
    %11 = vector.load %arg2[%c2, %c0_6, %c0_7] : memref<9x8x256xf32, #tpu.memory_space<vmem>>, vector<1x8x256xf32>
    %12 = vector.shape_cast %11 : vector<1x8x256xf32> to vector<8x256xf32>
    %13 = arith.mulf %10, %12 : vector<8x256xf32>
    %14 = arith.addf %9, %13 : vector<8x256xf32>
    %c1_i32 = arith.constant 1 : i32
    %15 = tpu.dynamic_rotate %0 by %c1_i32 dim 1 : vector<8x256xf32>, i32 -> vector<8x256xf32>
    %c3 = arith.constant 3 : index
    %c0_8 = arith.constant 0 : index
    %c0_9 = arith.constant 0 : index
    %16 = vector.load %arg2[%c3, %c0_8, %c0_9] : memref<9x8x256xf32, #tpu.memory_space<vmem>>, vector<1x8x256xf32>
    %17 = vector.shape_cast %16 : vector<1x8x256xf32> to vector<8x256xf32>
    %18 = arith.mulf %15, %17 : vector<8x256xf32>
    %19 = arith.addf %14, %18 : vector<8x256xf32>
    %c4 = arith.constant 4 : index
    %c0_10 = arith.constant 0 : index
    %c0_11 = arith.constant 0 : index
    %20 = vector.load %arg2[%c4, %c0_10, %c0_11] : memref<9x8x256xf32, #tpu.memory_space<vmem>>, vector<1x8x256xf32>
    %21 = vector.shape_cast %20 : vector<1x8x256xf32> to vector<8x256xf32>
    %22 = arith.mulf %0, %21 : vector<8x256xf32>
    %23 = arith.addf %19, %22 : vector<8x256xf32>
    %c255_i32 = arith.constant 255 : i32
    %24 = tpu.dynamic_rotate %0 by %c255_i32 dim 1 : vector<8x256xf32>, i32 -> vector<8x256xf32>
    %c5 = arith.constant 5 : index
    %c0_12 = arith.constant 0 : index
    %c0_13 = arith.constant 0 : index
    %25 = vector.load %arg2[%c5, %c0_12, %c0_13] : memref<9x8x256xf32, #tpu.memory_space<vmem>>, vector<1x8x256xf32>
    %26 = vector.shape_cast %25 : vector<1x8x256xf32> to vector<8x256xf32>
    %27 = arith.mulf %24, %26 : vector<8x256xf32>
    %28 = arith.addf %23, %27 : vector<8x256xf32>
    %c241_i32 = arith.constant 241 : i32
    %29 = tpu.dynamic_rotate %0 by %c241_i32 dim 1 : vector<8x256xf32>, i32 -> vector<8x256xf32>
    %c6 = arith.constant 6 : index
    %c0_14 = arith.constant 0 : index
    %c0_15 = arith.constant 0 : index
    %30 = vector.load %arg2[%c6, %c0_14, %c0_15] : memref<9x8x256xf32, #tpu.memory_space<vmem>>, vector<1x8x256xf32>
    %31 = vector.shape_cast %30 : vector<1x8x256xf32> to vector<8x256xf32>
    %32 = arith.mulf %29, %31 : vector<8x256xf32>
    %33 = arith.addf %28, %32 : vector<8x256xf32>
    %c240_i32 = arith.constant 240 : i32
    %34 = tpu.dynamic_rotate %0 by %c240_i32 dim 1 : vector<8x256xf32>, i32 -> vector<8x256xf32>
    %c7 = arith.constant 7 : index
    %c0_16 = arith.constant 0 : index
    %c0_17 = arith.constant 0 : index
    %35 = vector.load %arg2[%c7, %c0_16, %c0_17] : memref<9x8x256xf32, #tpu.memory_space<vmem>>, vector<1x8x256xf32>
    %36 = vector.shape_cast %35 : vector<1x8x256xf32> to vector<8x256xf32>
    %37 = arith.mulf %34, %36 : vector<8x256xf32>
    %38 = arith.addf %33, %37 : vector<8x256xf32>
    %c239_i32 = arith.constant 239 : i32
    %39 = tpu.dynamic_rotate %0 by %c239_i32 dim 1 : vector<8x256xf32>, i32 -> vector<8x256xf32>
    %c8 = arith.constant 8 : index
    %c0_18 = arith.constant 0 : index
    %c0_19 = arith.constant 0 : index
    %40 = vector.load %arg2[%c8, %c0_18, %c0_19] : memref<9x8x256xf32, #tpu.memory_space<vmem>>, vector<1x8x256xf32>
    %41 = vector.shape_cast %40 : vector<1x8x256xf32> to vector<8x256xf32>
    %42 = arith.mulf %39, %41 : vector<8x256xf32>
    %43 = arith.addf %38, %42 : vector<8x256xf32>
    %c0_20 = arith.constant 0 : index
    %c0_21 = arith.constant 0 : index
    %c0_22 = arith.constant 0 : index
    %44 = vector.load %arg3[%c0_20, %c0_21, %c0_22] : memref<4x8x256xf32, #tpu.memory_space<vmem>>, vector<4x8x256xf32>
    %c0_23 = arith.constant 0 : index
    %c0_24 = arith.constant 0 : index
    %45 = vector.load %arg4[%c0_23, %c0_24] : memref<8x256xf32, #tpu.memory_space<vmem>>, vector<8x256xf32>
    %46 = vector.extract_strided_slice %43 {offsets = [0, 0], sizes = [1, 256], strides = [1, 1]} : vector<8x256xf32> to vector<1x256xf32>
    %47 = vector.shape_cast %46 : vector<1x256xf32> to vector<256xf32>
    %48 = vector.shape_cast %47 : vector<256xf32> to vector<1x256xf32>
    %49 = vector.shape_cast %48 : vector<1x256xf32> to vector<1x256xf32>
    %50 = vector.broadcast %49 : vector<1x256xf32> to vector<8x256xf32>
    %51 = vector.extract_strided_slice %44 {offsets = [0, 0, 0], sizes = [1, 8, 256], strides = [1, 1, 1]} : vector<4x8x256xf32> to vector<1x8x256xf32>
    %52 = vector.shape_cast %51 : vector<1x8x256xf32> to vector<8x256xf32>
    %53 = arith.mulf %50, %52 : vector<8x256xf32>
    %54 = arith.addf %45, %53 : vector<8x256xf32>
    %55 = vector.extract_strided_slice %43 {offsets = [1, 0], sizes = [1, 256], strides = [1, 1]} : vector<8x256xf32> to vector<1x256xf32>
    %56 = vector.shape_cast %55 : vector<1x256xf32> to vector<256xf32>
    %57 = vector.shape_cast %56 : vector<256xf32> to vector<1x256xf32>
    %58 = vector.shape_cast %57 : vector<1x256xf32> to vector<1x256xf32>
    %59 = vector.broadcast %58 : vector<1x256xf32> to vector<8x256xf32>
    %60 = vector.extract_strided_slice %44 {offsets = [1, 0, 0], sizes = [1, 8, 256], strides = [1, 1, 1]} : vector<4x8x256xf32> to vector<1x8x256xf32>
    %61 = vector.shape_cast %60 : vector<1x8x256xf32> to vector<8x256xf32>
    %62 = arith.mulf %59, %61 : vector<8x256xf32>
    %63 = arith.addf %54, %62 : vector<8x256xf32>
    %64 = vector.extract_strided_slice %43 {offsets = [2, 0], sizes = [1, 256], strides = [1, 1]} : vector<8x256xf32> to vector<1x256xf32>
    %65 = vector.shape_cast %64 : vector<1x256xf32> to vector<256xf32>
    %66 = vector.shape_cast %65 : vector<256xf32> to vector<1x256xf32>
    %67 = vector.shape_cast %66 : vector<1x256xf32> to vector<1x256xf32>
    %68 = vector.broadcast %67 : vector<1x256xf32> to vector<8x256xf32>
    %69 = vector.extract_strided_slice %44 {offsets = [2, 0, 0], sizes = [1, 8, 256], strides = [1, 1, 1]} : vector<4x8x256xf32> to vector<1x8x256xf32>
    %70 = vector.shape_cast %69 : vector<1x8x256xf32> to vector<8x256xf32>
    %71 = arith.mulf %68, %70 : vector<8x256xf32>
    %72 = arith.addf %63, %71 : vector<8x256xf32>
    %73 = vector.extract_strided_slice %43 {offsets = [3, 0], sizes = [1, 256], strides = [1, 1]} : vector<8x256xf32> to vector<1x256xf32>
    %74 = vector.shape_cast %73 : vector<1x256xf32> to vector<256xf32>
    %75 = vector.shape_cast %74 : vector<256xf32> to vector<1x256xf32>
    %76 = vector.shape_cast %75 : vector<1x256xf32> to vector<1x256xf32>
    %77 = vector.broadcast %76 : vector<1x256xf32> to vector<8x256xf32>
    %78 = vector.extract_strided_slice %44 {offsets = [3, 0, 0], sizes = [1, 8, 256], strides = [1, 1, 1]} : vector<4x8x256xf32> to vector<1x8x256xf32>
    %79 = vector.shape_cast %78 : vector<1x8x256xf32> to vector<8x256xf32>
    %80 = arith.mulf %77, %79 : vector<8x256xf32>
    %81 = arith.addf %72, %80 : vector<8x256xf32>
    %82 = vector.extract_strided_slice %43 {offsets = [4, 0], sizes = [1, 256], strides = [1, 1]} : vector<8x256xf32> to vector<1x256xf32>
    %83 = vector.shape_cast %82 : vector<1x256xf32> to vector<256xf32>
    %84 = vector.shape_cast %83 : vector<256xf32> to vector<1x256xf32>
    %85 = vector.shape_cast %84 : vector<1x256xf32> to vector<1x256xf32>
    %86 = vector.broadcast %85 : vector<1x256xf32> to vector<8x256xf32>
    %87 = vector.extract_strided_slice %44 {offsets = [0, 0, 0], sizes = [1, 8, 256], strides = [1, 1, 1]} : vector<4x8x256xf32> to vector<1x8x256xf32>
    %88 = vector.shape_cast %87 : vector<1x8x256xf32> to vector<8x256xf32>
    %89 = arith.mulf %86, %88 : vector<8x256xf32>
    %90 = arith.addf %45, %89 : vector<8x256xf32>
    %91 = vector.extract_strided_slice %43 {offsets = [5, 0], sizes = [1, 256], strides = [1, 1]} : vector<8x256xf32> to vector<1x256xf32>
    %92 = vector.shape_cast %91 : vector<1x256xf32> to vector<256xf32>
    %93 = vector.shape_cast %92 : vector<256xf32> to vector<1x256xf32>
    %94 = vector.shape_cast %93 : vector<1x256xf32> to vector<1x256xf32>
    %95 = vector.broadcast %94 : vector<1x256xf32> to vector<8x256xf32>
    %96 = vector.extract_strided_slice %44 {offsets = [1, 0, 0], sizes = [1, 8, 256], strides = [1, 1, 1]} : vector<4x8x256xf32> to vector<1x8x256xf32>
    %97 = vector.shape_cast %96 : vector<1x8x256xf32> to vector<8x256xf32>
    %98 = arith.mulf %95, %97 : vector<8x256xf32>
    %99 = arith.addf %90, %98 : vector<8x256xf32>
    %100 = vector.extract_strided_slice %43 {offsets = [6, 0], sizes = [1, 256], strides = [1, 1]} : vector<8x256xf32> to vector<1x256xf32>
    %101 = vector.shape_cast %100 : vector<1x256xf32> to vector<256xf32>
    %102 = vector.shape_cast %101 : vector<256xf32> to vector<1x256xf32>
    %103 = vector.shape_cast %102 : vector<1x256xf32> to vector<1x256xf32>
    %104 = vector.broadcast %103 : vector<1x256xf32> to vector<8x256xf32>
    %105 = vector.extract_strided_slice %44 {offsets = [2, 0, 0], sizes = [1, 8, 256], strides = [1, 1, 1]} : vector<4x8x256xf32> to vector<1x8x256xf32>
    %106 = vector.shape_cast %105 : vector<1x8x256xf32> to vector<8x256xf32>
    %107 = arith.mulf %104, %106 : vector<8x256xf32>
    %108 = arith.addf %99, %107 : vector<8x256xf32>
    %109 = vector.extract_strided_slice %43 {offsets = [7, 0], sizes = [1, 256], strides = [1, 1]} : vector<8x256xf32> to vector<1x256xf32>
    %110 = vector.shape_cast %109 : vector<1x256xf32> to vector<256xf32>
    %111 = vector.shape_cast %110 : vector<256xf32> to vector<1x256xf32>
    %112 = vector.shape_cast %111 : vector<1x256xf32> to vector<1x256xf32>
    %113 = vector.broadcast %112 : vector<1x256xf32> to vector<8x256xf32>
    %114 = vector.extract_strided_slice %44 {offsets = [3, 0, 0], sizes = [1, 8, 256], strides = [1, 1, 1]} : vector<4x8x256xf32> to vector<1x8x256xf32>
    %115 = vector.shape_cast %114 : vector<1x8x256xf32> to vector<8x256xf32>
    %116 = arith.mulf %113, %115 : vector<8x256xf32>
    %117 = arith.addf %108, %116 : vector<8x256xf32>
    %118 = tpu.concatenate %81, %117 in 0 : vector<8x256xf32>, vector<8x256xf32> -> vector<16x256xf32>
    %c0_25 = arith.constant 0 : index
    %c0_26 = arith.constant 0 : index
    %119 = vector.load %arg5[%c0_25, %c0_26] : memref<16x256xf32, #tpu.memory_space<vmem>>, vector<16x256xf32>
    tpu.vector_store %arg5[%c0_25, %c0_26], %118 {strides = array<i32>} : memref<16x256xf32, #tpu.memory_space<vmem>>, vector<16x256xf32>,
    return
  }
  func.func @transform_0(%arg0: i32) -> (i32, i32) {
    %c0_i32 = arith.constant 0 : i32
    %c0_i32_0 = arith.constant 0 : i32
    return %arg0, %c0_i32 : i32, i32
  }
  func.func @transform_1(%arg0: i32) -> (i32, i32, i32) {
    %c0_i32 = arith.constant 0 : i32
    %c0_i32_0 = arith.constant 0 : i32
    %c0_i32_1 = arith.constant 0 : i32
    %c0_i32_2 = arith.constant 0 : i32
    return %c0_i32, %c0_i32_0, %c0_i32_1 : i32, i32, i32
  }
  func.func @transform_2(%arg0: i32) -> (i32, i32, i32) {
    %c0_i32 = arith.constant 0 : i32
    %c0_i32_0 = arith.constant 0 : i32
    %c0_i32_1 = arith.constant 0 : i32
    %c0_i32_2 = arith.constant 0 : i32
    return %c0_i32, %c0_i32_0, %c0_i32_1 : i32, i32, i32
  }
  func.func @transform_3(%arg0: i32) -> (i32, i32) {
    %c0_i32 = arith.constant 0 : i32
    %c0_i32_0 = arith.constant 0 : i32
    %c0_i32_1 = arith.constant 0 : i32
    return %c0_i32, %c0_i32_0 : i32, i32
  }
  func.func @transform_4(%arg0: i32) -> (i32, i32) {
    %c0_i32 = arith.constant 0 : i32
    %c0_i32_0 = arith.constant 0 : i32
    return %arg0, %c0_i32 : i32, i32
  }
}

</mosaic_0001>

<llo_original>
// kernel: tpu_custom_call.1
$region0: #{tpu_custom_call.1}
  #allocation0 [shape = 'u32[]', space=smem, size = 0x4, offset = 0x4, fixed_abs, tag = 'smem constant byte address 0x4 - core index']
  #allocation1 [shape = 'u32[144,128]{1,0:T(1,128)}', space=vmem, size = 0x12000, scoped, tag = 'internal scratch']
  %s0 = inlined_call_operand.hbm [shape: f32[8,256], index: 0, kind: input, shape index: {}]
  %s1 = inlined_call_operand.hbm [shape: f32[9,8,256], index: 1, kind: input, shape index: {}]
  %s2 = inlined_call_operand.hbm [shape: f32[4,8,256], index: 2, kind: input, shape index: {}]
  %s3 = inlined_call_operand.hbm [shape: f32[8,256], index: 3, kind: input, shape index: {}]
  %s4 = inlined_call_operand.hbm [shape: f32[16,256], index: 4, kind: output, shape index: {}]
  %s5 = sld [smem:[#allocation0]]
  $region42: #{tpu_custom_call.1} parent=0
    _
  %s7 = ssub.s32 1, %s5
  %s8 = scalar_select 0, %s7, %s5
  $region1: #{tpu_custom_call.1} parent=0
    #allocation2 [shape = 'u8[8192]{0}', space=vmem, size = 0x2000, scoped, tag = 'input window, operand 0, single buffered']
    #allocation3 [shape = 's32[1]{0}', space=sflag, size = 0x4, scoped, tag = 'scoped memory for tpu_custom_call.1']
    #allocation4 [shape = 's32[1]{0}', space=sflag, size = 0x4, scoped, tag = 'scoped memory for tpu_custom_call.1']
    #allocation5 [shape = 'u8[73728]{0}', space=vmem, size = 0x12000, scoped, tag = 'input window, operand 1, single buffered']
    #allocation6 [shape = 's32[1]{0}', space=sflag, size = 0x4, scoped, tag = 'scoped memory for tpu_custom_call.1']
    #allocation7 [shape = 'u8[32768]{0}', space=vmem, size = 0x8000, scoped, tag = 'input window, operand 2, single buffered']
    #allocation8 [shape = 'u8[8192]{0}', space=vmem, size = 0x2000, scoped, tag = 'input window, operand 3, single buffered']
    #allocation9 [shape = 's32[1]{0}', space=sflag, size = 0x4, scoped, tag = 'scoped memory for tpu_custom_call.1']
    #allocation10 [shape = 'u8[16384]{0}', space=vmem, size = 0x4000, scoped, tag = 'output window, operand 0, single buffered']
    %9 = vsyncpa [#allocation3], 0
    %10 = vsyncpa [#allocation6], 0
    %11 = vsyncpa [#allocation9], 0
    %12 = vsyncpa [#allocation4], 0
    // Predicated region
    $region2: #{tpu_custom_call.1} parent=1 // pred_check
      _
    $region3: #{tpu_custom_call.1} parent=1 // pred_check_branch
      %14 = sbr.rel (0) target = $region5
    $region4: #{tpu_custom_call.1} parent=1 // pred_region
      %s16 = ssub.s32 256, 256
      %17 = vsyncadd [#allocation3], %s16
      %s19 = sshll.u32 [#allocation2], 4
      %s20 = int_to_ptr.vmem [resolvable:$true] %s19
      %22 = dma.hbm_to_vmem [thread:$0]  %s0, 256, %s20, [#allocation3]
    $region5: #{tpu_custom_call.1} parent=1 // pred_fallthru
      _
    // Predicated region
    $region6: #{tpu_custom_call.1} parent=1 // pred_check
      _
    $region7: #{tpu_custom_call.1} parent=1 // pred_check_branch
      %24 = sbr.rel (0) target = $region9
    $region8: #{tpu_custom_call.1} parent=1 // pred_region
      %s26 = ssub.s32 2304, 2304
      %27 = vsyncadd [#allocation6], %s26
      %s28 = sshll.u32 [#allocation5], 4
      %s29 = int_to_ptr.vmem [resolvable:$true] %s28
      %34 = dma.hbm_to_vmem [thread:$0]  %s1, 2304, %s29, [#allocation6], 256, 256, 16
    $region9: #{tpu_custom_call.1} parent=1 // pred_fallthru
      _
    // Predicated region
    $region10: #{tpu_custom_call.1} parent=1 // pred_check
      _
    $region11: #{tpu_custom_call.1} parent=1 // pred_check_branch
      %36 = sbr.rel (0) target = $region13
    $region12: #{tpu_custom_call.1} parent=1 // pred_region
      %s38 = ssub.s32 1024, 1024
      %39 = vsyncadd [#allocation6], %s38
      %s40 = sshll.u32 [#allocation7], 4
      %s41 = int_to_ptr.vmem [resolvable:$true] %s40
      %46 = dma.hbm_to_vmem [thread:$0]  %s2, 1024, %s41, [#allocation6], 256, 256, 16
    $region13: #{tpu_custom_call.1} parent=1 // pred_fallthru
      _
    // Predicated region
    $region14: #{tpu_custom_call.1} parent=1 // pred_check
      _
    $region15: #{tpu_custom_call.1} parent=1 // pred_check_branch
      %48 = sbr.rel (0) target = $region17
    $region16: #{tpu_custom_call.1} parent=1 // pred_region
      %s50 = ssub.s32 256, 256
      %51 = vsyncadd [#allocation9], %s50
      %s53 = sshll.u32 [#allocation8], 4
      %s54 = int_to_ptr.vmem [resolvable:$true] %s53
      %56 = dma.hbm_to_vmem [thread:$0]  %s3, 256, %s54, [#allocation9]
    $region17: #{tpu_custom_call.1} parent=1 // pred_fallthru
      _
    // Predicated region
    $region18: #{tpu_custom_call.1} parent=1 // pred_check
      _
    $region19: #{tpu_custom_call.1} parent=1 // pred_check_branch
      %58 = sbr.rel (0) target = $region21
    $region20: #{tpu_custom_call.1} parent=1 // pred_region
      %59 = dma.done [#allocation3], 256
    $region21: #{tpu_custom_call.1} parent=1 // pred_fallthru
      _
    // Predicated region
    $region22: #{tpu_custom_call.1} parent=1 // pred_check
      _
    $region23: #{tpu_custom_call.1} parent=1 // pred_check_branch
      %61 = sbr.rel (0) target = $region25
    $region24: #{tpu_custom_call.1} parent=1 // pred_region
      %62 = dma.done [#allocation6], 2304
    $region25: #{tpu_custom_call.1} parent=1 // pred_fallthru
      _
    // Predicated region
    $region26: #{tpu_custom_call.1} parent=1 // pred_check
      _
    $region27: #{tpu_custom_call.1} parent=1 // pred_check_branch
      %64 = sbr.rel (0) target = $region29
    $region28: #{tpu_custom_call.1} parent=1 // pred_region
      %65 = dma.done [#allocation6], 1024
    $region29: #{tpu_custom_call.1} parent=1 // pred_fallthru
      _
    // Predicated region
    $region30: #{tpu_custom_call.1} parent=1 // pred_check
      _
    $region31: #{tpu_custom_call.1} parent=1 // pred_check_branch
      %67 = sbr.rel (0) target = $region33
    $region32: #{tpu_custom_call.1} parent=1 // pred_region
      %68 = dma.done [#allocation9], 256
    $region33: #{tpu_custom_call.1} parent=1 // pred_fallthru
      _
    %v69 = vld [vmem:[#allocation2] sm:$0xff]
    %v70 = vld [vmem:[#allocation2 + $0x8] sm:$0xff]
    %71 = vrot.lane.b32.xlu0 %v69, 17
    %v72 = vpop.permute.xlu0 %71
    %73 = vrot.lane.b32.xlu0 %v70, 17
    %v74 = vpop.permute.xlu0 %73
    %v75 = vlaneseq
    %v76 = vand.u32 %v75, 127
    %vm77 = vcmp.lt.s32.totalorder %v76, 17
    %v78 = vsel %vm77, %v72, %v74
    %v79 = vsel %vm77, %v74, %v72
    %v80 = vld [vmem:[#allocation5] sm:$0xff]
    %v81 = vld [vmem:[#allocation5 + $0x8] sm:$0xff]
    %v82 = vmul.f32 %v79, %v80
    %v83 = vmul.f32 %v78, %v81
    %84 = vrot.lane.b32.xlu0 %v69, 16
    %v85 = vpop.permute.xlu0 %84
    %86 = vrot.lane.b32.xlu0 %v70, 16
    %v87 = vpop.permute.xlu0 %86
    %vm88 = vcmp.lt.s32.totalorder %v76, 16
    %v89 = vsel %vm88, %v85, %v87
    %v90 = vsel %vm88, %v87, %v85
    %s91 = scalar_lea.vmem [#allocation5], 16
    %v92 = vld [vmem:[%s91] sm:$0xff]
    %v93 = vld [vmem:[%s91 + $0x8] sm:$0xff]
    %v94 = vmul.f32 %v90, %v92
    %v95 = vmul.f32 %v89, %v93
    %v96 = vadd.f32 %v82, %v94
    %v97 = vadd.f32 %v83, %v95
    %98 = vrot.lane.b32.xlu0 %v69, 15
    %v99 = vpop.permute.xlu0 %98
    %100 = vrot.lane.b32.xlu0 %v70, 15
    %v101 = vpop.permute.xlu0 %100
    %vm102 = vcmp.lt.s32.totalorder %v76, 15
    %v103 = vsel %vm102, %v99, %v101
    %v104 = vsel %vm102, %v101, %v99
    %s105 = scalar_lea.vmem [#allocation5], 32
    %v106 = vld [vmem:[%s105] sm:$0xff]
    %v107 = vld [vmem:[%s105 + $0x8] sm:$0xff]
    %v108 = vmul.f32 %v104, %v106
    %v109 = vmul.f32 %v103, %v107
    %v110 = vadd.f32 %v96, %v108
    %v111 = vadd.f32 %v97, %v109
    %112 = vrot.lane.b32.xlu0 %v69, 1
    %v113 = vpop.permute.xlu0 %112
    %114 = vrot.lane.b32.xlu0 %v70, 1
    %v115 = vpop.permute.xlu0 %114
    %vm116 = vcmp.lt.s32.totalorder %v76, 1
    %v117 = vsel %vm116, %v113, %v115
    %v118 = vsel %vm116, %v115, %v113
    %s119 = scalar_lea.vmem [#allocation5], 48
    %v120 = vld [vmem:[%s119] sm:$0xff]
    %v121 = vld [vmem:[%s119 + $0x8] sm:$0xff]
    %v122 = vmul.f32 %v118, %v120
    %v123 = vmul.f32 %v117, %v121
    %v124 = vadd.f32 %v110, %v122
    %v125 = vadd.f32 %v111, %v123
    %s126 = scalar_lea.vmem [#allocation5], 64
    %v127 = vld [vmem:[%s126] sm:$0xff]
    %v128 = vld [vmem:[%s126 + $0x8] sm:$0xff]
    %v129 = vmul.f32 %v69, %v127
    %v130 = vmul.f32 %v70, %v128
    %v131 = vadd.f32 %v124, %v129
    %v132 = vadd.f32 %v125, %v130
    %133 = vrot.lane.b32.xlu0 %v69, 127
    %v134 = vpop.permute.xlu0 %133
    %135 = vrot.lane.b32.xlu0 %v70, 127
    %v136 = vpop.permute.xlu0 %135
    %vm137 = vcmp.lt.s32.totalorder %v76, 127
    %v138 = vsel %vm137, %v134, %v136
    %v139 = vsel %vm137, %v136, %v134
    %s140 = scalar_lea.vmem [#allocation5], 80
    %v141 = vld [vmem:[%s140] sm:$0xff]
    %v142 = vld [vmem:[%s140 + $0x8] sm:$0xff]
    %v143 = vmul.f32 %v138, %v141
    %v144 = vmul.f32 %v139, %v142
    %v145 = vadd.f32 %v131, %v143
    %v146 = vadd.f32 %v132, %v144
    %147 = vrot.lane.b32.xlu0 %v69, 113
    %v148 = vpop.permute.xlu0 %147
    %149 = vrot.lane.b32.xlu0 %v70, 113
    %v150 = vpop.permute.xlu0 %149
    %vm151 = vcmp.lt.s32.totalorder %v76, 113
    %v152 = vsel %vm151, %v148, %v150
    %v153 = vsel %vm151, %v150, %v148
    %s154 = scalar_lea.vmem [#allocation5], 96
    %v155 = vld [vmem:[%s154] sm:$0xff]
    %v156 = vld [vmem:[%s154 + $0x8] sm:$0xff]
    %v157 = vmul.f32 %v152, %v155
    %v158 = vmul.f32 %v153, %v156
    %v159 = vadd.f32 %v145, %v157
    %v160 = vadd.f32 %v146, %v158
    %161 = vrot.lane.b32.xlu0 %v69, 112
    %v162 = vpop.permute.xlu0 %161
    %163 = vrot.lane.b32.xlu0 %v70, 112
    %v164 = vpop.permute.xlu0 %163
    %vm165 = vcmp.lt.s32.totalorder %v76, 112
    %v166 = vsel %vm165, %v162, %v164
    %v167 = vsel %vm165, %v164, %v162
    %s168 = scalar_lea.vmem [#allocation5], 112
    %v169 = vld [vmem:[%s168] sm:$0xff]
    %v170 = vld [vmem:[%s168 + $0x8] sm:$0xff]
    %v171 = vmul.f32 %v166, %v169
    %v172 = vmul.f32 %v167, %v170
    %v173 = vadd.f32 %v159, %v171
    %v174 = vadd.f32 %v160, %v172
    %175 = vrot.lane.b32.xlu0 %v69, 111
    %v176 = vpop.permute.xlu0 %175
    %177 = vrot.lane.b32.xlu0 %v70, 111
    %v178 = vpop.permute.xlu0 %177
    %vm179 = vcmp.lt.s32.totalorder %v76, 111
    %v180 = vsel %vm179, %v176, %v178
    %v181 = vsel %vm179, %v178, %v176
    %s182 = scalar_lea.vmem [#allocation5], 128
    %v183 = vld [vmem:[%s182] sm:$0xff]
    %v184 = vld [vmem:[%s182 + $0x8] sm:$0xff]
    %v185 = vmul.f32 %v180, %v183
    %v186 = vmul.f32 %v181, %v184
    %v187 = vadd.f32 %v173, %v185
    %v188 = vadd.f32 %v174, %v186
    %v189 = vld [vmem:[#allocation7] sm:$0xff]
    %v190 = vld [vmem:[#allocation7 + $0x8] sm:$0xff]
    %v191 = vld [vmem:[#allocation7 + $0x10] sm:$0xff]
    %v192 = vld [vmem:[#allocation7 + $0x18] sm:$0xff]
    %v193 = vld [vmem:[#allocation7 + $0x20] sm:$0xff]
    %v194 = vld [vmem:[#allocation7 + $0x28] sm:$0xff]
    %v195 = vld [vmem:[#allocation7 + $0x30] sm:$0xff]
    %v196 = vld [vmem:[#allocation7 + $0x38] sm:$0xff]
    %v197 = vld [vmem:[#allocation8] sm:$0xff]
    %v198 = vld [vmem:[#allocation8 + $0x8] sm:$0xff]
    %v199 = vlaneseq
    %v200 = vshrl.u32 %v199, 7
    %v201 = vsub.s32 0, %v200
    %v202 = vrot.slane %v187, %v201
    %v203 = vlaneseq
    %v204 = vshrl.u32 %v203, 7
    %v205 = vsub.s32 0, %v204
    %v206 = vrot.slane %v188, %v205
    %v207 = vmul.f32 %v202, %v189
    %v208 = vmul.f32 %v206, %v190
    %v209 = vadd.f32 %v197, %v207
    %v210 = vadd.f32 %v198, %v208
    %v211 = vlaneseq
    %v212 = vshrl.u32 %v211, 7
    %v213 = vsub.s32 1, %v212
    %v214 = vrot.slane %v187, %v213
    %v215 = vlaneseq
    %v216 = vshrl.u32 %v215, 7
    %v217 = vsub.s32 1, %v216
    %v218 = vrot.slane %v188, %v217
    %v219 = vmul.f32 %v214, %v191
    %v220 = vmul.f32 %v218, %v192
    %v221 = vadd.f32 %v209, %v219
    %v222 = vadd.f32 %v210, %v220
    %v223 = vlaneseq
    %v224 = vshrl.u32 %v223, 7
    %v225 = vsub.s32 2, %v224
    %v226 = vrot.slane %v187, %v225
    %v227 = vlaneseq
    %v228 = vshrl.u32 %v227, 7
    %v229 = vsub.s32 2, %v228
    %v230 = vrot.slane %v188, %v229
    %v231 = vmul.f32 %v226, %v193
    %v232 = vmul.f32 %v230, %v194
    %v233 = vadd.f32 %v221, %v231
    %v234 = vadd.f32 %v222, %v232
    %v235 = vlaneseq
    %v236 = vshrl.u32 %v235, 7
    %v237 = vsub.s32 3, %v236
    %v238 = vrot.slane %v187, %v237
    %v239 = vlaneseq
    %v240 = vshrl.u32 %v239, 7
    %v241 = vsub.s32 3, %v240
    %v242 = vrot.slane %v188, %v241
    %v243 = vmul.f32 %v238, %v195
    %v244 = vmul.f32 %v242, %v196
    %v245 = vadd.f32 %v233, %v243
    %v246 = vadd.f32 %v234, %v244
    %v247 = vlaneseq
    %v248 = vshrl.u32 %v247, 7
    %v249 = vsub.s32 4, %v248
    %v250 = vrot.slane %v187, %v249
    %v251 = vlaneseq
    %v252 = vshrl.u32 %v251, 7
    %v253 = vsub.s32 4, %v252
    %v254 = vrot.slane %v188, %v253
    %v255 = vmul.f32 %v250, %v189
    %v256 = vmul.f32 %v254, %v190
    %v257 = vadd.f32 %v197, %v255
    %v258 = vadd.f32 %v198, %v256
    %v259 = vlaneseq
    %v260 = vshrl.u32 %v259, 7
    %v261 = vsub.s32 5, %v260
    %v262 = vrot.slane %v187, %v261
    %v263 = vlaneseq
    %v264 = vshrl.u32 %v263, 7
    %v265 = vsub.s32 5, %v264
    %v266 = vrot.slane %v188, %v265
    %v267 = vmul.f32 %v262, %v191
    %v268 = vmul.f32 %v266, %v192
    %v269 = vadd.f32 %v257, %v267
    %v270 = vadd.f32 %v258, %v268
    %v271 = vlaneseq
    %v272 = vshrl.u32 %v271, 7
    %v273 = vsub.s32 6, %v272
    %v274 = vrot.slane %v187, %v273
    %v275 = vlaneseq
    %v276 = vshrl.u32 %v275, 7
    %v277 = vsub.s32 6, %v276
    %v278 = vrot.slane %v188, %v277
    %v279 = vmul.f32 %v274, %v193
    %v280 = vmul.f32 %v278, %v194
    %v281 = vadd.f32 %v269, %v279
    %v282 = vadd.f32 %v270, %v280
    %v283 = vlaneseq
    %v284 = vshrl.u32 %v283, 7
    %v285 = vsub.s32 7, %v284
    %v286 = vrot.slane %v187, %v285
    %v287 = vlaneseq
    %v288 = vshrl.u32 %v287, 7
    %v289 = vsub.s32 7, %v288
    %v290 = vrot.slane %v188, %v289
    %v291 = vmul.f32 %v286, %v195
    %v292 = vmul.f32 %v290, %v196
    %v293 = vadd.f32 %v281, %v291
    %v294 = vadd.f32 %v282, %v292
    %295 = vst [vmem:[#allocation10] sm:$0xff] %v245
    %296 = vst [vmem:[#allocation10 + $0x8] sm:$0xff] %v246
    %297 = vst [vmem:[#allocation10 + $0x10] sm:$0xff] %v293
    %298 = vst [vmem:[#allocation10 + $0x18] sm:$0xff] %v294
    // Predicated region
    $region34: #{tpu_custom_call.1} parent=1 // pred_check
      _
    $region35: #{tpu_custom_call.1} parent=1 // pred_check_branch
      %300 = sbr.rel (0) target = $region37
    $region36: #{tpu_custom_call.1} parent=1 // pred_region
      %s302 = ssub.s32 512, 512
      %303 = vsyncadd [#allocation4], %s302
      %s304 = sshll.u32 [#allocation10], 4
      %s305 = int_to_ptr.vmem [resolvable:$true] %s304
      %310 = dma.vmem_to_hbm [thread:$0]  %s305, 512, %s4, [#allocation4], 256, 256, 16
    $region37: #{tpu_custom_call.1} parent=1 // pred_fallthru
      _
    // Predicated region
    $region38: #{tpu_custom_call.1} parent=1 // pred_check
      _
    $region39: #{tpu_custom_call.1} parent=1 // pred_check_branch
      %312 = sbr.rel (0) target = $region41
    $region40: #{tpu_custom_call.1} parent=1 // pred_region
      %313 = dma.done [#allocation4], 512
    $region41: #{tpu_custom_call.1} parent=1 // pred_fallthru
      _
    %314 = vsyncpa [#allocation3], 1
    %315 = vsyncpa [#allocation6], 1
    %316 = vsyncpa [#allocation9], 1
    %317 = vsyncpa [#allocation4], 1

</llo_original>
